<compile_context>
chip_gen: v5e
topology: v5e:2x2
jax: 0.10.0
libtpu: 0.0.40
codegen_flags: <defaults>
</compile_context>

<pallas_src>
import jax
import jax.numpy as jnp
from jax.experimental import pallas as pl
from jax.experimental.pallas import tpu as pltpu

EPS = 1e-5
# MXU input dtype.  f32 keeps the strict 1e-3 check against the all-f32 reference.
# For production on v6e/v7x set MXU_DTYPE = jnp.bfloat16 (2-4x MXU throughput and
# half the activation/weight VMEM bytes); accumulation and BN statistics stay f32
# either way, but expect ~1e-2-level deviations vs. an all-f32 reference.
MXU_DTYPE = jnp.float32


def _banded_weight_cat(w, W):
    """HWIO (3,3,Cin,Cout) -> (3*W*Cin, W*Cout) concatenated banded matmul weight.

    For row-offset dh the block satisfies
        band[dh][p*Cin+ci, x*Cout+co] = w[dh, dw, ci, co]  with  p == x + dw - 1,
    so one (N*H, 3*W*Cin) x (3*W*Cin, W*Cout) matmul performs the whole 3x3 conv:
    the K axis is [row h-1 | row h | row h+1] (each W*Cin wide) and SAME padding
    along W is folded in (out-of-range taps simply have no band entry).
    """
    kh, kw, cin, cout = w.shape
    x_idx = jnp.arange(W)[:, None, None]
    dw_idx = jnp.arange(kw)[None, :, None]
    p_idx = jnp.arange(W)[None, None, :]
    ind = (p_idx == x_idx + dw_idx - 1).astype(w.dtype)            # (W, 3, W)
    band = jnp.einsum("xdp,hdio->hpixo", ind, w)                   # (3, W, Cin, W, Cout)
    return band.reshape(kh * W * cin, W * cout)


def double_conv(x_nchw, w1, g1, b1, w2, g2, b2):
    """x_nchw: (N, Cin, H, W); w*: (3,3,Cin,Cout) HWIO; g*/b*: (C,)."""
    N, Cin, H, W = x_nchw.shape
    Cmid, Cout = w1.shape[-1], w2.shape[-1]
    R = N * H                       # rows of the lane-dense activation slab
    P = N * H * W                   # BatchNorm reduction size

    # NCHW -> lane-dense (N*H, W*Cin) with channels minor.
    # TODO(synk): if the surrounding model can run NHWC end-to-end, drop these
    # wrapper transposes (each one is a full HBM round trip at real sizes).
    x = jnp.transpose(x_nchw, (0, 2, 3, 1)).reshape(R, W * Cin).astype(jnp.float32)

    # TODO(synk): for non-toy W the band must be built per W-tile (Wt*C in the
    # 128-512 lane range with a 1-column halo) -- the full band's footprint and
    # redundant FLOPs scale as W^2 and W/3 and would not fit v7x's 64 MiB VMEM.
    bw1 = _banded_weight_cat(w1.astype(jnp.float32), W).astype(MXU_DTYPE)
    bw2 = _banded_weight_cat(w2.astype(jnp.float32), W).astype(MXU_DTYPE)

    # Pack gamma/beta of both BN layers into one operand (one DMA, not four).
    Cmax = max(Cmid, Cout)
    gb = jnp.zeros((4, Cmax), jnp.float32)
    gb = gb.at[0, :Cmid].set(g1.astype(jnp.float32))
    gb = gb.at[1, :Cmid].set(b1.astype(jnp.float32))
    gb = gb.at[2, :Cout].set(g2.astype(jnp.float32))
    gb = gb.at[3, :Cout].set(b2.astype(jnp.float32))

    def kernel(x_ref, bw1_ref, bw2_ref, gb_ref, out_ref):
        def shifted_cat(v):
            # v: (N, H, Wc) -> (N*H, 3*Wc) = [row h-1 | row h | row h+1] with a
            # zero 1-row halo per image (SAME padding along H).
            # TODO(synk): a sublane pltpu.roll + iota boundary mask would do this
            # shift on the XLU and avoid the concatenate relayout copies.
            Wc = v.shape[-1]
            z = jnp.zeros((N, 1, Wc), jnp.float32)
            up = jnp.concatenate([z, v[:, :H - 1, :]], axis=1)     # input row h-1
            dn = jnp.concatenate([v[:, 1:, :], z], axis=1)         # input row h+1
            return jnp.concatenate([up, v, dn], axis=-1).reshape(R, 3 * Wc)

        def conv_bn_relu(v, bw_ref, gamma, beta, c_out):
            # Single fused MXU matmul per stage: K = 3*W*c_in.
            a = shifted_cat(v)
            acc = jnp.dot(a.astype(MXU_DTYPE), bw_ref[...],
                          preferred_element_type=jnp.float32)      # (R, W*c_out)

            # Training-mode BatchNorm (biased variance, eps=1e-5), lane-dense:
            # fold (1, W*c_out) stats to (1, c_out) via a 0/1 selector matmul and
            # broadcast scale/shift back through its transpose (both on the MXU).
            Wc = W * c_out
            i_idx = jax.lax.broadcasted_iota(jnp.int32, (Wc, c_out), 0)
            c_idx = jax.lax.broadcasted_iota(jnp.int32, (Wc, c_out), 1)
            sel = (i_idx % c_out == c_idx).astype(jnp.float32)     # (W*c_out, c_out)

            # TODO(synk): one-pass E[x^2]-E[x]^2 is fine at this scale; use a
            # two-phase / Welford scheme when BN is accumulated across a grid.
            s1 = jnp.sum(acc, axis=0, keepdims=True)               # (1, W*c_out)
            s2 = jnp.sum(acc * acc, axis=0, keepdims=True)
            st = jnp.concatenate([s1, s2], axis=0)                 # (2, W*c_out)
            st_c = jnp.dot(st, sel, preferred_element_type=jnp.float32)  # (2, c_out)
            mean = st_c[0:1] / P
            var = jnp.maximum(st_c[1:2] / P - mean * mean, 0.0)
            scale = gamma * jax.lax.rsqrt(var + EPS)               # (1, c_out)
            shift = beta - mean * scale
            ss = jnp.concatenate([scale, shift], axis=0)           # (2, c_out)
            ss_full = jax.lax.dot_general(                          # (2, W*c_out)
                ss, sel, (((1,), (1,)), ((), ())),
                preferred_element_type=jnp.float32)
            y = acc * ss_full[0:1] + ss_full[1:2]
            return jnp.maximum(y, 0.0)                             # (R, W*c_out)

        gbv = gb_ref[...]
        h1 = conv_bn_relu(x_ref[...].reshape(N, H, W * Cin), bw1_ref,
                          gbv[0:1, :Cmid], gbv[1:2, :Cmid], Cmid)
        h2 = conv_bn_relu(h1.reshape(N, H, W * Cmid), bw2_ref,
                          gbv[2:3, :Cout], gbv[3:4, :Cout], Cout)
        out_ref[...] = h2                                          # lane-dense store

    # TODO(synk): for real UNet shapes add a grid over row blocks (BlockSpec
    # auto-pipelining, row tiles a multiple of 8) with two-phase BN (pass 1
    # accumulates per-channel sum/sumsq across an 'arbitrary' axis, pass 2
    # normalizes + ReLU), mark the row axis "parallel" for v7x's two TensorCores,
    # and budget VMEM via pltpu.CompilerParams(vmem_limit_bytes=...) for v7x's
    # 64 MiB.  The tested toy shape fits comfortably in VMEM as one program.
    vmem = pl.BlockSpec(memory_space=pltpu.MemorySpace.VMEM)
    out = pl.pallas_call(
        kernel,
        out_shape=jax.ShapeDtypeStruct((R, W * Cout), jnp.float32),
        in_specs=[vmem] * 4,
        out_specs=vmem,
    )(x, bw1, bw2, gb)

    # (N*H, W*Cout) slab -> NCHW
    return jnp.transpose(out.reshape(N, H, W, Cout), (0, 3, 1, 2))


def reference(x_nchw, w1, g1, b1, w2, g2, b2):
    """Pure-JAX reference of the PyTorch forward (training-mode BN)."""
    def block(x, w, g, b):
        y = jax.lax.conv_general_dilated(
            x, w, window_strides=(1, 1), padding="SAME",
            dimension_numbers=("NHWC", "HWIO", "NHWC"))
        mean = jnp.mean(y, axis=(0, 1, 2), keepdims=True)
        var = jnp.var(y, axis=(0, 1, 2), keepdims=True)
        y = (y - mean) * jax.lax.rsqrt(var + EPS) * g + b
        return jnp.maximum(y, 0.0)

    x = jnp.transpose(x_nchw, (0, 2, 3, 1))
    h = block(x, w1, g1, b1)
    h = block(h, w2, g2, b2)
    return jnp.transpose(h, (0, 3, 1, 2))


if __name__ == "__main__":
    key = jax.random.PRNGKey(0)
    kx, k1, k2 = jax.random.split(key, 3)

    # DoubleConv(in_channels=4, out_channels=8) -> mid_channels = 8
    N, Cin, H, W = 2, 4, 16, 16
    Cmid = Cout = 8

    x = jax.random.normal(kx, (N, Cin, H, W), jnp.float32)
    # Deterministic synthetic conv weights (HWIO), shape-matched to nn.Conv2d (bias=False).
    w1 = jax.random.normal(k1, (3, 3, Cin, Cmid), jnp.float32) * 0.1
    w2 = jax.random.normal(k2, (3, 3, Cmid, Cout), jnp.float32) * 0.1
    # BatchNorm2d default init: weight=1, bias=0.
    g1, b1 = jnp.ones((Cmid,), jnp.float32), jnp.zeros((Cmid,), jnp.float32)
    g2, b2 = jnp.ones((Cout,), jnp.float32), jnp.zeros((Cout,), jnp.float32)

    y = double_conv(x, w1, g1, b1, w2, g2, b2)
    jax.block_until_ready(y)

    y_ref = reference(x, w1, g1, b1, w2, g2, b2)
    assert y.shape == (N, Cout, H, W)
    assert jnp.allclose(y, y_ref, atol=1e-3, rtol=1e-3), "mismatch vs reference"
    print("KERNEL_OK")
</pallas_src>

<mosaic_0001>
module attributes {stable_mosaic.version = 11 : i64} {
  func.func @kernel(%arg0: memref<32x64xf32, #tpu.memory_space<vmem>>, %arg1: memref<192x128xf32, #tpu.memory_space<vmem>>, %arg2: memref<384x128xf32, #tpu.memory_space<vmem>>, %arg3: memref<4x8xf32, #tpu.memory_space<vmem>>, %arg4: memref<32x128xf32, #tpu.memory_space<vmem>>) attributes {dimension_semantics = [], scalar_prefetch = 0 : i64, scratch_operands = 0 : i64, tpu.core_type = #tpu.core_type<tc>} {
    %c0 = arith.constant 0 : index
    %c0_0 = arith.constant 0 : index
    %0 = vector.load %arg3[%c0, %c0_0] : memref<4x8xf32, #tpu.memory_space<vmem>>, vector<4x8xf32>
    %c0_1 = arith.constant 0 : index
    %c0_2 = arith.constant 0 : index
    %1 = vector.load %arg0[%c0_1, %c0_2] : memref<32x64xf32, #tpu.memory_space<vmem>>, vector<32x64xf32>
    %2 = vector.shape_cast %1 : vector<32x64xf32> to vector<2x16x64xf32>
    %3 = vector.extract_strided_slice %0 {offsets = [0, 0], sizes = [1, 8], strides = [1, 1]} : vector<4x8xf32> to vector<1x8xf32>
    %4 = vector.extract_strided_slice %0 {offsets = [1, 0], sizes = [1, 8], strides = [1, 1]} : vector<4x8xf32> to vector<1x8xf32>
    %cst = arith.constant 0.000000e+00 : f32
    %5 = vector.broadcast %cst : f32 to vector<2x1x64xf32>
    %6 = vector.extract_strided_slice %2 {offsets = [0, 0, 0], sizes = [2, 15, 64], strides = [1, 1, 1]} : vector<2x16x64xf32> to vector<2x15x64xf32>
    %7 = tpu.concatenate %5, %6 in 1 : vector<2x1x64xf32>, vector<2x15x64xf32> -> vector<2x16x64xf32>
    %8 = vector.extract_strided_slice %2 {offsets = [0, 1, 0], sizes = [2, 15, 64], strides = [1, 1, 1]} : vector<2x16x64xf32> to vector<2x15x64xf32>
    %9 = tpu.concatenate %8, %5 in 1 : vector<2x15x64xf32>, vector<2x1x64xf32> -> vector<2x16x64xf32>
    %10 = tpu.concatenate %7, %2, %9 in 2 : vector<2x16x64xf32>, vector<2x16x64xf32>, vector<2x16x64xf32> -> vector<2x16x192xf32>
    %11 = vector.shape_cast %10 : vector<2x16x192xf32> to vector<32x192xf32>
    %c0_3 = arith.constant 0 : index
    %c0_4 = arith.constant 0 : index
    %12 = vector.load %arg1[%c0_3, %c0_4] : memref<192x128xf32, #tpu.memory_space<vmem>>, vector<192x128xf32>
    %cst_5 = arith.constant dense<0.000000e+00> : vector<32x128xf32>
    %13 = tpu.matmul %11, %12, %cst_5 {dimension_numbers = #tpu.dot_dimension_numbers<[1], [0], [0], [1], [0, 0, 1, 1], [], []>} : vector<32x192xf32>, vector<192x128xf32>, vector<32x128xf32> -> vector<32x128xf32>
    %14 = tpu.iota {dimensions = array<i32: 0>} : vector<128x8xi32>
    %15 = tpu.iota {dimensions = array<i32: 1>} : vector<128x8xi32>
    %c8_i32 = arith.constant 8 : i32
    %c0_i32 = arith.constant 0 : i32
    %16 = arith.cmpi eq, %c8_i32, %c0_i32 : i32
    %c1_i32 = arith.constant 1 : i32
    %17 = arith.select %16, %c1_i32, %c8_i32 : i32
    %18 = vector.broadcast %17 : i32 to vector<128x8xi32>
    %19 = arith.remsi %14, %18 : vector<128x8xi32>
    %c0_i32_6 = arith.constant 0 : i32
    %20 = vector.broadcast %c0_i32_6 : i32 to vector<128x8xi32>
    %21 = arith.cmpi ne, %19, %20 : vector<128x8xi32>
    %c0_i32_7 = arith.constant 0 : i32
    %22 = vector.broadcast %c0_i32_7 : i32 to vector<128x8xi32>
    %23 = arith.cmpi slt, %19, %22 : vector<128x8xi32>
    %c0_i32_8 = arith.constant 0 : i32
    %24 = arith.cmpi slt, %17, %c0_i32_8 : i32
    %25 = vector.broadcast %24 : i1 to vector<128x8xi1>
    %26 = vector.broadcast %25 : vector<128x8xi1> to vector<128x8xi1>
    %27 = arith.xori %23, %26 : vector<128x8xi1>
    %28 = arith.andi %27, %21 : vector<128x8xi1>
    %29 = vector.broadcast %17 : i32 to vector<128x8xi32>
    %30 = arith.addi %19, %29 : vector<128x8xi32>
    %31 = arith.select %28, %30, %19 : vector<128x8xi1>, vector<128x8xi32>
    %32 = arith.cmpi eq, %31, %15 : vector<128x8xi32>
    %33 = arith.extui %32 : vector<128x8xi1> to vector<128x8xi32>
    %34 = arith.sitofp %33 : vector<128x8xi32> to vector<128x8xf32>
    %cst_9 = arith.constant dense<0.000000e+00> : vector<128xf32>
    %35 = vector.multi_reduction <add>, %13, %cst_9 [0] : vector<32x128xf32> to vector<128xf32>
    %36 = vector.shape_cast %35 : vector<128xf32> to vector<1x128xf32>
    %37 = arith.mulf %13, %13 : vector<32x128xf32>
    %cst_10 = arith.constant dense<0.000000e+00> : vector<128xf32>
    %38 = vector.multi_reduction <add>, %37, %cst_10 [0] : vector<32x128xf32> to vector<128xf32>
    %39 = vector.shape_cast %38 : vector<128xf32> to vector<1x128xf32>
    %40 = tpu.concatenate %36, %39 in 0 : vector<1x128xf32>, vector<1x128xf32> -> vector<2x128xf32>
    %cst_11 = arith.constant dense<0.000000e+00> : vector<2x8xf32>
    %41 = tpu.matmul %40, %34, %cst_11 {dimension_numbers = #tpu.dot_dimension_numbers<[1], [0], [0], [1], [0, 0, 1, 1], [], []>} : vector<2x128xf32>, vector<128x8xf32>, vector<2x8xf32> -> vector<2x8xf32>
    %42 = vector.extract_strided_slice %41 {offsets = [0, 0], sizes = [1, 8], strides = [1, 1]} : vector<2x8xf32> to vector<1x8xf32>
    %cst_12 = arith.constant 5.120000e+02 : f32
    %43 = vector.broadcast %cst_12 : f32 to vector<1x8xf32>
    %44 = arith.divf %42, %43 : vector<1x8xf32>
    %45 = vector.extract_strided_slice %41 {offsets = [1, 0], sizes = [1, 8], strides = [1, 1]} : vector<2x8xf32> to vector<1x8xf32>
    %cst_13 = arith.constant 5.120000e+02 : f32
    %46 = vector.broadcast %cst_13 : f32 to vector<1x8xf32>
    %47 = arith.divf %45, %46 : vector<1x8xf32>
    %48 = arith.mulf %44, %44 : vector<1x8xf32>
    %49 = arith.subf %47, %48 : vector<1x8xf32>
    %cst_14 = arith.constant 0.000000e+00 : f32
    %50 = vector.broadcast %cst_14 : f32 to vector<1x8xf32>
    %51 = arith.maximumf %49, %50 : vector<1x8xf32>
    %cst_15 = arith.constant 9.99999974E-6 : f32
    %52 = vector.broadcast %cst_15 : f32 to vector<1x8xf32>
    %53 = arith.addf %51, %52 : vector<1x8xf32>
    %54 = math.rsqrt %53 : vector<1x8xf32>
    %55 = arith.mulf %3, %54 : vector<1x8xf32>
    %56 = arith.mulf %44, %55 : vector<1x8xf32>
    %57 = arith.subf %4, %56 : vector<1x8xf32>
    %58 = tpu.concatenate %55, %57 in 0 : vector<1x8xf32>, vector<1x8xf32> -> vector<2x8xf32>
    %cst_16 = arith.constant dense<0.000000e+00> : vector<2x128xf32>
    %59 = tpu.matmul %58, %34, %cst_16 {dimension_numbers = #tpu.dot_dimension_numbers<[1], [1], [0], [0], [0, 0, 1, 0], [], []>} : vector<2x8xf32>, vector<128x8xf32>, vector<2x128xf32> -> vector<2x128xf32>
    %60 = vector.extract_strided_slice %59 {offsets = [0, 0], sizes = [1, 128], strides = [1, 1]} : vector<2x128xf32> to vector<1x128xf32>
    %61 = vector.broadcast %60 : vector<1x128xf32> to vector<32x128xf32>
    %62 = arith.mulf %13, %61 : vector<32x128xf32>
    %63 = vector.extract_strided_slice %59 {offsets = [1, 0], sizes = [1, 128], strides = [1, 1]} : vector<2x128xf32> to vector<1x128xf32>
    %64 = vector.broadcast %63 : vector<1x128xf32> to vector<32x128xf32>
    %65 = arith.addf %62, %64 : vector<32x128xf32>
    %cst_17 = arith.constant 0.000000e+00 : f32
    %66 = vector.broadcast %cst_17 : f32 to vector<32x128xf32>
    %67 = arith.maximumf %65, %66 : vector<32x128xf32>
    %68 = vector.shape_cast %67 : vector<32x128xf32> to vector<2x16x128xf32>
    %69 = vector.extract_strided_slice %0 {offsets = [2, 0], sizes = [1, 8], strides = [1, 1]} : vector<4x8xf32> to vector<1x8xf32>
    %70 = vector.extract_strided_slice %0 {offsets = [3, 0], sizes = [1, 8], strides = [1, 1]} : vector<4x8xf32> to vector<1x8xf32>
    %cst_18 = arith.constant 0.000000e+00 : f32
    %71 = vector.broadcast %cst_18 : f32 to vector<2x1x128xf32>
    %72 = vector.extract_strided_slice %68 {offsets = [0, 0, 0], sizes = [2, 15, 128], strides = [1, 1, 1]} : vector<2x16x128xf32> to vector<2x15x128xf32>
    %73 = tpu.concatenate %71, %72 in 1 : vector<2x1x128xf32>, vector<2x15x128xf32> -> vector<2x16x128xf32>
    %74 = vector.extract_strided_slice %68 {offsets = [0, 1, 0], sizes = [2, 15, 128], strides = [1, 1, 1]} : vector<2x16x128xf32> to vector<2x15x128xf32>
    %75 = tpu.concatenate %74, %71 in 1 : vector<2x15x128xf32>, vector<2x1x128xf32> -> vector<2x16x128xf32>
    %76 = tpu.concatenate %73, %68, %75 in 2 : vector<2x16x128xf32>, vector<2x16x128xf32>, vector<2x16x128xf32> -> vector<2x16x384xf32>
    %77 = vector.shape_cast %76 : vector<2x16x384xf32> to vector<32x384xf32>
    %c0_19 = arith.constant 0 : index
    %c0_20 = arith.constant 0 : index
    %78 = vector.load %arg2[%c0_19, %c0_20] : memref<384x128xf32, #tpu.memory_space<vmem>>, vector<384x128xf32>
    %cst_21 = arith.constant dense<0.000000e+00> : vector<32x128xf32>
    %79 = tpu.matmul %77, %78, %cst_21 {dimension_numbers = #tpu.dot_dimension_numbers<[1], [0], [0], [1], [0, 0, 1, 1], [], []>} : vector<32x384xf32>, vector<384x128xf32>, vector<32x128xf32> -> vector<32x128xf32>
    %80 = tpu.iota {dimensions = array<i32: 0>} : vector<128x8xi32>
    %81 = tpu.iota {dimensions = array<i32: 1>} : vector<128x8xi32>
    %c8_i32_22 = arith.constant 8 : i32
    %c0_i32_23 = arith.constant 0 : i32
    %82 = arith.cmpi eq, %c8_i32_22, %c0_i32_23 : i32
    %c1_i32_24 = arith.constant 1 : i32
    %83 = arith.select %82, %c1_i32_24, %c8_i32_22 : i32
    %84 = vector.broadcast %83 : i32 to vector<128x8xi32>
    %85 = arith.remsi %80, %84 : vector<128x8xi32>
    %c0_i32_25 = arith.constant 0 : i32
    %86 = vector.broadcast %c0_i32_25 : i32 to vector<128x8xi32>
    %87 = arith.cmpi ne, %85, %86 : vector<128x8xi32>
    %c0_i32_26 = arith.constant 0 : i32
    %88 = vector.broadcast %c0_i32_26 : i32 to vector<128x8xi32>
    %89 = arith.cmpi slt, %85, %88 : vector<128x8xi32>
    %c0_i32_27 = arith.constant 0 : i32
    %90 = arith.cmpi slt, %83, %c0_i32_27 : i32
    %91 = vector.broadcast %90 : i1 to vector<128x8xi1>
    %92 = vector.broadcast %91 : vector<128x8xi1> to vector<128x8xi1>
    %93 = arith.xori %89, %92 : vector<128x8xi1>
    %94 = arith.andi %93, %87 : vector<128x8xi1>
    %95 = vector.broadcast %83 : i32 to vector<128x8xi32>
    %96 = arith.addi %85, %95 : vector<128x8xi32>
    %97 = arith.select %94, %96, %85 : vector<128x8xi1>, vector<128x8xi32>
    %98 = arith.cmpi eq, %97, %81 : vector<128x8xi32>
    %99 = arith.extui %98 : vector<128x8xi1> to vector<128x8xi32>
    %100 = arith.sitofp %99 : vector<128x8xi32> to vector<128x8xf32>
    %cst_28 = arith.constant dense<0.000000e+00> : vector<128xf32>
    %101 = vector.multi_reduction <add>, %79, %cst_28 [0] : vector<32x128xf32> to vector<128xf32>
    %102 = vector.shape_cast %101 : vector<128xf32> to vector<1x128xf32>
    %103 = arith.mulf %79, %79 : vector<32x128xf32>
    %cst_29 = arith.constant dense<0.000000e+00> : vector<128xf32>
    %104 = vector.multi_reduction <add>, %103, %cst_29 [0] : vector<32x128xf32> to vector<128xf32>
    %105 = vector.shape_cast %104 : vector<128xf32> to vector<1x128xf32>
    %106 = tpu.concatenate %102, %105 in 0 : vector<1x128xf32>, vector<1x128xf32> -> vector<2x128xf32>
    %cst_30 = arith.constant dense<0.000000e+00> : vector<2x8xf32>
    %107 = tpu.matmul %106, %100, %cst_30 {dimension_numbers = #tpu.dot_dimension_numbers<[1], [0], [0], [1], [0, 0, 1, 1], [], []>} : vector<2x128xf32>, vector<128x8xf32>, vector<2x8xf32> -> vector<2x8xf32>
    %108 = vector.extract_strided_slice %107 {offsets = [0, 0], sizes = [1, 8], strides = [1, 1]} : vector<2x8xf32> to vector<1x8xf32>
    %cst_31 = arith.constant 5.120000e+02 : f32
    %109 = vector.broadcast %cst_31 : f32 to vector<1x8xf32>
    %110 = arith.divf %108, %109 : vector<1x8xf32>
    %111 = vector.extract_strided_slice %107 {offsets = [1, 0], sizes = [1, 8], strides = [1, 1]} : vector<2x8xf32> to vector<1x8xf32>
    %cst_32 = arith.constant 5.120000e+02 : f32
    %112 = vector.broadcast %cst_32 : f32 to vector<1x8xf32>
    %113 = arith.divf %111, %112 : vector<1x8xf32>
    %114 = arith.mulf %110, %110 : vector<1x8xf32>
    %115 = arith.subf %113, %114 : vector<1x8xf32>
    %cst_33 = arith.constant 0.000000e+00 : f32
    %116 = vector.broadcast %cst_33 : f32 to vector<1x8xf32>
    %117 = arith.maximumf %115, %116 : vector<1x8xf32>
    %cst_34 = arith.constant 9.99999974E-6 : f32
    %118 = vector.broadcast %cst_34 : f32 to vector<1x8xf32>
    %119 = arith.addf %117, %118 : vector<1x8xf32>
    %120 = math.rsqrt %119 : vector<1x8xf32>
    %121 = arith.mulf %69, %120 : vector<1x8xf32>
    %122 = arith.mulf %110, %121 : vector<1x8xf32>
    %123 = arith.subf %70, %122 : vector<1x8xf32>
    %124 = tpu.concatenate %121, %123 in 0 : vector<1x8xf32>, vector<1x8xf32> -> vector<2x8xf32>
    %cst_35 = arith.constant dense<0.000000e+00> : vector<2x128xf32>
    %125 = tpu.matmul %124, %100, %cst_35 {dimension_numbers = #tpu.dot_dimension_numbers<[1], [1], [0], [0], [0, 0, 1, 0], [], []>} : vector<2x8xf32>, vector<128x8xf32>, vector<2x128xf32> -> vector<2x128xf32>
    %126 = vector.extract_strided_slice %125 {offsets = [0, 0], sizes = [1, 128], strides = [1, 1]} : vector<2x128xf32> to vector<1x128xf32>
    %127 = vector.broadcast %126 : vector<1x128xf32> to vector<32x128xf32>
    %128 = arith.mulf %79, %127 : vector<32x128xf32>
    %129 = vector.extract_strided_slice %125 {offsets = [1, 0], sizes = [1, 128], strides = [1, 1]} : vector<2x128xf32> to vector<1x128xf32>
    %130 = vector.broadcast %129 : vector<1x128xf32> to vector<32x128xf32>
    %131 = arith.addf %128, %130 : vector<32x128xf32>
    %cst_36 = arith.constant 0.000000e+00 : f32
    %132 = vector.broadcast %cst_36 : f32 to vector<32x128xf32>
    %133 = arith.maximumf %131, %132 : vector<32x128xf32>
    %c0_37 = arith.constant 0 : index
    %c0_38 = arith.constant 0 : index
    %134 = vector.load %arg4[%c0_37, %c0_38] : memref<32x128xf32, #tpu.memory_space<vmem>>, vector<32x128xf32>
    tpu.vector_store %arg4[%c0_37, %c0_38], %133 {strides = array<i32>} : memref<32x128xf32, #tpu.memory_space<vmem>>, vector<32x128xf32>,
    return
  }
}

</mosaic_0001>

<llo_original>
// kernel: tpu_custom_call.1
$region0: #{tpu_custom_call.1}
  #allocation0 [shape = 'u32[]', space=smem, size = 0x4, offset = 0x4, fixed_abs, tag = 'smem constant byte address 0x4 - core index']
  #allocation1 [shape = 'u32[72,128]{1,0:T(1,128)}', space=vmem, size = 0x9000, scoped, tag = 'internal scratch']
  %s0 = inlined_call_operand.hbm [shape: f32[32,64], index: 0, kind: input, shape index: {}]
  %s1 = inlined_call_operand.hbm [shape: f32[192,128], index: 1, kind: input, shape index: {}]
  %s2 = inlined_call_operand.hbm [shape: f32[384,128], index: 2, kind: input, shape index: {}]
  %s3 = inlined_call_operand.hbm [shape: f32[4,8], index: 3, kind: input, shape index: {}]
  %s4 = inlined_call_operand.hbm [shape: f32[32,128], index: 4, kind: output, shape index: {}]
  %s5 = sld [smem:[#allocation0]]
  $region42: #{tpu_custom_call.1} parent=0
    _
  %s7 = ssub.s32 1, %s5
  %s8 = scalar_select 0, %s7, %s5
  $region1: #{tpu_custom_call.1} parent=0
    #allocation2 [shape = 'u8[16384]{0}', space=vmem, size = 0x4000, scoped, tag = 'input window, operand 0, single buffered']
    #allocation3 [shape = 's32[1]{0}', space=sflag, size = 0x4, scoped, tag = 'scoped memory for tpu_custom_call.1']
    #allocation4 [shape = 's32[1]{0}', space=sflag, size = 0x4, scoped, tag = 'scoped memory for tpu_custom_call.1']
    #allocation5 [shape = 'u8[98304]{0}', space=vmem, size = 0x18000, scoped, tag = 'input window, operand 1, single buffered']
    #allocation6 [shape = 's32[1]{0}', space=sflag, size = 0x4, scoped, tag = 'scoped memory for tpu_custom_call.1']
    #allocation7 [shape = 'u8[196608]{0}', space=vmem, size = 0x30000, scoped, tag = 'input window, operand 2, single buffered']
    #allocation8 [shape = 'u8[2048]{0}', space=vmem, size = 0x800, scoped, tag = 'input window, operand 3, single buffered']
    #allocation9 [shape = 's32[1]{0}', space=sflag, size = 0x4, scoped, tag = 'scoped memory for tpu_custom_call.1']
    #allocation10 [shape = 'u8[16384]{0}', space=vmem, size = 0x4000, scoped, tag = 'output window, operand 0, single buffered']
    %9 = vsyncpa [#allocation3], 0
    %10 = vsyncpa [#allocation6], 0
    %11 = vsyncpa [#allocation9], 0
    %12 = vsyncpa [#allocation4], 0
    // Predicated region
    $region2: #{tpu_custom_call.1} parent=1 // pred_check
      _
    $region3: #{tpu_custom_call.1} parent=1 // pred_check_branch
      %14 = sbr.rel (0) target = $region5
    $region4: #{tpu_custom_call.1} parent=1 // pred_region
      %16 = vsyncadd [#allocation3], 0
      %s17 = sshll.u32 %s0, 4
      %s18 = int_to_ptr.hbm [resolvable:$true] %s17
      %s19 = sshll.u32 [#allocation2], 4
      %s20 = int_to_ptr.vmem [resolvable:$true] %s19
      %25 = dma.hbm_to_vmem [thread:$0]  %s18, 512, %s20, [#allocation3], 128, 128, 8
    $region5: #{tpu_custom_call.1} parent=1 // pred_fallthru
      _
    // Predicated region
    $region6: #{tpu_custom_call.1} parent=1 // pred_check
      _
    $region7: #{tpu_custom_call.1} parent=1 // pred_check_branch
      %27 = sbr.rel (0) target = $region9
    $region8: #{tpu_custom_call.1} parent=1 // pred_region
      %29 = vsyncadd [#allocation6], 0
      %s30 = sshll.u32 %s1, 4
      %s31 = int_to_ptr.hbm [resolvable:$true] %s30
      %s32 = sshll.u32 [#allocation5], 4
      %s33 = int_to_ptr.vmem [resolvable:$true] %s32
      %38 = dma.hbm_to_vmem [thread:$0]  %s31, 3072, %s33, [#allocation6], 128, 128, 8
    $region9: #{tpu_custom_call.1} parent=1 // pred_fallthru
      _
    // Predicated region
    $region10: #{tpu_custom_call.1} parent=1 // pred_check
      _
    $region11: #{tpu_custom_call.1} parent=1 // pred_check_branch
      %40 = sbr.rel (0) target = $region13
    $region12: #{tpu_custom_call.1} parent=1 // pred_region
      %42 = vsyncadd [#allocation6], 0
      %s43 = sshll.u32 %s2, 4
      %s44 = int_to_ptr.hbm [resolvable:$true] %s43
      %s45 = sshll.u32 [#allocation7], 4
      %s46 = int_to_ptr.vmem [resolvable:$true] %s45
      %51 = dma.hbm_to_vmem [thread:$0]  %s44, 6144, %s46, [#allocation6], 128, 128, 8
    $region13: #{tpu_custom_call.1} parent=1 // pred_fallthru
      _
    // Predicated region
    $region14: #{tpu_custom_call.1} parent=1 // pred_check
      _
    $region15: #{tpu_custom_call.1} parent=1 // pred_check_branch
      %53 = sbr.rel (0) target = $region17
    $region16: #{tpu_custom_call.1} parent=1 // pred_region
      %55 = vsyncadd [#allocation9], 0
      %s57 = sshll.u32 %s3, 4
      %s58 = int_to_ptr.hbm [resolvable:$true] %s57
      %s59 = sshll.u32 [#allocation8], 4
      %s60 = int_to_ptr.vmem [resolvable:$true] %s59
      %62 = dma.hbm_to_vmem [thread:$0]  %s58, 64, %s60, [#allocation9]
    $region17: #{tpu_custom_call.1} parent=1 // pred_fallthru
      _
    // Predicated region
    $region18: #{tpu_custom_call.1} parent=1 // pred_check
      _
    $region19: #{tpu_custom_call.1} parent=1 // pred_check_branch
      %64 = sbr.rel (0) target = $region21
    $region20: #{tpu_custom_call.1} parent=1 // pred_region
      %66 = dma.done [#allocation3], 512
    $region21: #{tpu_custom_call.1} parent=1 // pred_fallthru
      _
    // Predicated region
    $region22: #{tpu_custom_call.1} parent=1 // pred_check
      _
    $region23: #{tpu_custom_call.1} parent=1 // pred_check_branch
      %68 = sbr.rel (0) target = $region25
    $region24: #{tpu_custom_call.1} parent=1 // pred_region
      %70 = dma.done [#allocation6], 3072
    $region25: #{tpu_custom_call.1} parent=1 // pred_fallthru
      _
    // Predicated region
    $region26: #{tpu_custom_call.1} parent=1 // pred_check
      _
    $region27: #{tpu_custom_call.1} parent=1 // pred_check_branch
      %72 = sbr.rel (0) target = $region29
    $region28: #{tpu_custom_call.1} parent=1 // pred_region
      %74 = dma.done [#allocation6], 6144
    $region29: #{tpu_custom_call.1} parent=1 // pred_fallthru
      _
    // Predicated region
    $region30: #{tpu_custom_call.1} parent=1 // pred_check
      _
    $region31: #{tpu_custom_call.1} parent=1 // pred_check_branch
      %76 = sbr.rel (0) target = $region33
    $region32: #{tpu_custom_call.1} parent=1 // pred_region
      %78 = dma.done [#allocation9], 64
    $region33: #{tpu_custom_call.1} parent=1 // pred_fallthru
      _
    %v79 = vld [vmem:[#allocation8] sm:$0xf]
    %v80 = vld [vmem:[#allocation2] sm:$0xff]
    %v81 = vld [vmem:[#allocation2 + $0x8] sm:$0xff]
    %v82 = vld [vmem:[#allocation2 + $0x10] sm:$0xff]
    %v83 = vld [vmem:[#allocation2 + $0x18] sm:$0xff]
    %vm88 = vcmask 1040384
    %v89 = vrot.slane %v80, 7
    %v90 = vrot.slane %v81, 7
    %v91 = vsel %vm88, %v89, %v90
    %v92 = vrot.slane %v82, 7
    %v93 = vrot.slane %v83, 7
    %v94 = vsel %vm88, %v92, %v93
    %v99 = vsel %vm88, 0.0, %v89
    %v100 = vsel %vm88, 0.0, %v92
    %vm101 = vcmask 1046528
    %v102 = vrot.slane %v80, 1
    %v103 = vrot.slane %v81, 1
    %v104 = vsel %vm101, %v102, %v103
    %v105 = vrot.slane %v82, 1
    %v106 = vrot.slane %v83, 1
    %v107 = vsel %vm101, %v105, %v106
    %v110 = vsel %vm101, %v103, 0.0
    %v111 = vsel %vm101, %v106, 0.0
    %112 = vrot.lane.b32.xlu0 %v80, 64
    %v113 = vpop.permute.xlu0 %112
    %114 = vrot.lane.b32.xlu0 %v81, 64
    %v115 = vpop.permute.xlu0 %114
    %116 = vrot.lane.b32.xlu0 %v82, 64
    %v117 = vpop.permute.xlu0 %116
    %118 = vrot.lane.b32.xlu0 %v83, 64
    %v119 = vpop.permute.xlu0 %118
    %vm124 = vcmask 523264
    %v125 = vsel %vm124, %v99, %v113
    %v126 = vsel %vm124, %v91, %v115
    %v127 = vsel %vm124, %v100, %v117
    %v128 = vsel %vm124, %v94, %v119
    %v129 = vld [vmem:[#allocation5] sm:$0xff]
    %v130 = vld [vmem:[#allocation5 + $0x8] sm:$0xff]
    %v131 = vld [vmem:[#allocation5 + $0x10] sm:$0xff]
    %v132 = vld [vmem:[#allocation5 + $0x18] sm:$0xff]
    %v133 = vld [vmem:[#allocation5 + $0x20] sm:$0xff]
    %v134 = vld [vmem:[#allocation5 + $0x28] sm:$0xff]
    %v135 = vld [vmem:[#allocation5 + $0x30] sm:$0xff]
    %v136 = vld [vmem:[#allocation5 + $0x38] sm:$0xff]
    %v137 = vld [vmem:[#allocation5 + $0x40] sm:$0xff]
    %v138 = vld [vmem:[#allocation5 + $0x48] sm:$0xff]
    %v139 = vld [vmem:[#allocation5 + $0x50] sm:$0xff]
    %v140 = vld [vmem:[#allocation5 + $0x58] sm:$0xff]
    %v141 = vld [vmem:[#allocation5 + $0x60] sm:$0xff]
    %v142 = vld [vmem:[#allocation5 + $0x68] sm:$0xff]
    %v143 = vld [vmem:[#allocation5 + $0x70] sm:$0xff]
    %v144 = vld [vmem:[#allocation5 + $0x78] sm:$0xff]
    %v145 = vld [vmem:[#allocation5 + $0x80] sm:$0xff]
    %v146 = vld [vmem:[#allocation5 + $0x88] sm:$0xff]
    %v147 = vld [vmem:[#allocation5 + $0x90] sm:$0xff]
    %v148 = vld [vmem:[#allocation5 + $0x98] sm:$0xff]
    %v149 = vld [vmem:[#allocation5 + $0xa0] sm:$0xff]
    %v150 = vld [vmem:[#allocation5 + $0xa8] sm:$0xff]
    %v151 = vld [vmem:[#allocation5 + $0xb0] sm:$0xff]
    %v152 = vld [vmem:[#allocation5 + $0xb8] sm:$0xff]
    %v153 = vsel %vm124, %v104, 0
    %v156 = vsel %vm124, %v110, 0
    %v158 = vsel %vm124, %v107, 0
    %v161 = vsel %vm124, %v111, 0
    %163 = vmatpush.msra.mxu0 %v144
    %164 = vmatpush.msra.mxu0 %v143
    %165 = vmatpush.msra.mxu0 %v142
    %166 = vmatpush.msra.mxu0 %v141
    %167 = vmatpush.msra.mxu0 %v140
    %168 = vmatpush.msra.mxu0 %v139
    %169 = vmatpush.msra.mxu0 %v138
    %170 = vmatpush.msra.mxu0 %v137
    %171 = vmatpush.msra.mxu0 %v136
    %172 = vmatpush.msra.mxu0 %v135
    %173 = vmatpush.msra.mxu0 %v134
    %174 = vmatpush.msra.mxu0 %v133
    %175 = vmatpush.msra.mxu0 %v132
    %176 = vmatpush.msra.mxu0 %v131
    %177 = vmatpush.msra.mxu0 %v130
    %178 = vmatpush.msra.mxu0 %v129
    %179 = vmatmul.f32.gmra.mxu0 %v125
    %v180 = vpop.f32.mrf.mxu0
    %v181 = vadd.f32 0.0, %v180
    %182 = vmatmul.f32.gmra.mxu0 %v126
    %v183 = vpop.f32.mrf.mxu0
    %v184 = vadd.f32 0.0, %v183
    %185 = vmatmul.f32.gmra.mxu0 %v127
    %v186 = vpop.f32.mrf.mxu0
    %v187 = vadd.f32 0.0, %v186
    %188 = vmatmul.f32.gmra.mxu0 %v128
    %v189 = vpop.f32.mrf.mxu0
    %v190 = vadd.f32 0.0, %v189
    %191 = vdwg.mxu0
    %192 = vmatpush.msra.mxu0 0.0
    %193 = vmatpush.msra.mxu0 0.0
    %194 = vmatpush.msra.mxu0 0.0
    %195 = vmatpush.msra.mxu0 0.0
    %196 = vmatpush.msra.mxu0 0.0
    %197 = vmatpush.msra.mxu0 0.0
    %198 = vmatpush.msra.mxu0 0.0
    %199 = vmatpush.msra.mxu0 0.0
    %200 = vmatpush.msra.mxu0 %v152
    %201 = vmatpush.msra.mxu0 %v151
    %202 = vmatpush.msra.mxu0 %v150
    %203 = vmatpush.msra.mxu0 %v149
    %204 = vmatpush.msra.mxu0 %v148
    %205 = vmatpush.msra.mxu0 %v147
    %206 = vmatpush.msra.mxu0 %v146
    %207 = vmatpush.msra.mxu0 %v145
    %208 = vmatmul.f32.gmra.mxu0 %v153
    %v209 = vpop.f32.mrf.mxu0
    %v210 = vadd.f32 %v181, %v209
    %211 = vmatmul.f32.gmra.mxu0 %v156
    %v212 = vpop.f32.mrf.mxu0
    %v213 = vadd.f32 %v184, %v212
    %214 = vmatmul.f32.gmra.mxu0 %v158
    %v215 = vpop.f32.mrf.mxu0
    %v216 = vadd.f32 %v187, %v215
    %217 = vmatmul.f32.gmra.mxu0 %v161
    %v218 = vpop.f32.mrf.mxu0
    %v219 = vadd.f32 %v190, %v218
    %220 = vdwg.mxu0
    %v221 = vlaneseq
    %v222 = vshrl.u32 %v221, 7
    %v223 = vadd.s32 %v222, 8
    %v224 = vadd.s32 %v222, 16
    %v225 = vadd.s32 %v222, 24
    %v226 = vadd.s32 %v222, 32
    %v227 = vadd.s32 %v222, 40
    %v228 = vadd.s32 %v222, 48
    %v229 = vadd.s32 %v222, 56
    %v230 = vadd.s32 %v222, 64
    %v231 = vadd.s32 %v222, 72
    %v232 = vadd.s32 %v222, 80
    %v233 = vadd.s32 %v222, 88
    %v234 = vadd.s32 %v222, 96
    %v235 = vadd.s32 %v222, 104
    %v236 = vadd.s32 %v222, 112
    %v237 = vadd.s32 %v222, 120
    %v238 = vlaneseq
    %v239 = vand.u32 %v238, 127
    %vm240 = vcmp.lt.s32.totalorder %v222, 0
    %v241 = vsub.s32 0, %v222
    %v242 = vsel %vm240, %v241, %v222
    %v243 = vshrl.u32 %v242, 3
    %v244 = vand.u32 %v242, 7
    %v245 = vsub.s32 0, %v244
    %v246 = vsel %vm240, %v245, %v244
    %vm247 = vcmp.lt.s32.totalorder %v223, 0
    %v248 = vsub.s32 0, %v223
    %v249 = vsel %vm247, %v248, %v223
    %v250 = vshrl.u32 %v249, 3
    %v251 = vand.u32 %v249, 7
    %v252 = vsub.s32 0, %v251
    %v253 = vsel %vm247, %v252, %v251
    %vm254 = vcmp.lt.s32.totalorder %v224, 0
    %v255 = vsub.s32 0, %v224
    %v256 = vsel %vm254, %v255, %v224
    %v257 = vshrl.u32 %v256, 3
    %v258 = vand.u32 %v256, 7
    %v259 = vsub.s32 0, %v258
    %v260 = vsel %vm254, %v259, %v258
    %vm261 = vcmp.lt.s32.totalorder %v225, 0
    %v262 = vsub.s32 0, %v225
    %v263 = vsel %vm261, %v262, %v225
    %v264 = vshrl.u32 %v263, 3
    %v265 = vand.u32 %v263, 7
    %v266 = vsub.s32 0, %v265
    %v267 = vsel %vm261, %v266, %v265
    %vm268 = vcmp.lt.s32.totalorder %v226, 0
    %v269 = vsub.s32 0, %v226
    %v270 = vsel %vm268, %v269, %v226
    %v271 = vshrl.u32 %v270, 3
    %v272 = vand.u32 %v270, 7
    %v273 = vsub.s32 0, %v272
    %v274 = vsel %vm268, %v273, %v272
    %vm275 = vcmp.lt.s32.totalorder %v227, 0
    %v276 = vsub.s32 0, %v227
    %v277 = vsel %vm275, %v276, %v227
    %v278 = vshrl.u32 %v277, 3
    %v279 = vand.u32 %v277, 7
    %v280 = vsub.s32 0, %v279
    %v281 = vsel %vm275, %v280, %v279
    %vm282 = vcmp.lt.s32.totalorder %v228, 0
    %v283 = vsub.s32 0, %v228
    %v284 = vsel %vm282, %v283, %v228
    %v285 = vshrl.u32 %v284, 3
    %v286 = vand.u32 %v284, 7
    %v287 = vsub.s32 0, %v286
    %v288 = vsel %vm282, %v287, %v286
    %vm289 = vcmp.lt.s32.totalorder %v229, 0
    %v290 = vsub.s32 0, %v229
    %v291 = vsel %vm289, %v290, %v229
    %v292 = vshrl.u32 %v291, 3
    %v293 = vand.u32 %v291, 7
    %v294 = vsub.s32 0, %v293
    %v295 = vsel %vm289, %v294, %v293
    %vm296 = vcmp.lt.s32.totalorder %v230, 0
    %v297 = vsub.s32 0, %v230
    %v298 = vsel %vm296, %v297, %v230
    %v299 = vshrl.u32 %v298, 3
    %v300 = vand.u32 %v298, 7
    %v301 = vsub.s32 0, %v300
    %v302 = vsel %vm296, %v301, %v300
    %vm303 = vcmp.lt.s32.totalorder %v231, 0
    %v304 = vsub.s32 0, %v231
    %v305 = vsel %vm303, %v304, %v231
    %v306 = vshrl.u32 %v305, 3
    %v307 = vand.u32 %v305, 7
    %v308 = vsub.s32 0, %v307
    %v309 = vsel %vm303, %v308, %v307
    %vm310 = vcmp.lt.s32.totalorder %v232, 0
    %v311 = vsub.s32 0, %v232
    %v312 = vsel %vm310, %v311, %v232
    %v313 = vshrl.u32 %v312, 3
    %v314 = vand.u32 %v312, 7
    %v315 = vsub.s32 0, %v314
    %v316 = vsel %vm310, %v315, %v314
    %vm317 = vcmp.lt.s32.totalorder %v233, 0
    %v318 = vsub.s32 0, %v233
    %v319 = vsel %vm317, %v318, %v233
    %v320 = vshrl.u32 %v319, 3
    %v321 = vand.u32 %v319, 7
    %v322 = vsub.s32 0, %v321
    %v323 = vsel %vm317, %v322, %v321
    %vm324 = vcmp.lt.s32.totalorder %v234, 0
    %v325 = vsub.s32 0, %v234
    %v326 = vsel %vm324, %v325, %v234
    %v327 = vshrl.u32 %v326, 3
    %v328 = vand.u32 %v326, 7
    %v329 = vsub.s32 0, %v328
    %v330 = vsel %vm324, %v329, %v328
    %vm331 = vcmp.lt.s32.totalorder %v235, 0
    %v332 = vsub.s32 0, %v235
    %v333 = vsel %vm331, %v332, %v235
    %v334 = vshrl.u32 %v333, 3
    %v335 = vand.u32 %v333, 7
    %v336 = vsub.s32 0, %v335
    %v337 = vsel %vm331, %v336, %v335
    %vm338 = vcmp.lt.s32.totalorder %v236, 0
    %v339 = vsub.s32 0, %v236
    %v340 = vsel %vm338, %v339, %v236
    %v341 = vshrl.u32 %v340, 3
    %v342 = vand.u32 %v340, 7
    %v343 = vsub.s32 0, %v342
    %v344 = vsel %vm338, %v343, %v342
    %vm345 = vcmp.lt.s32.totalorder %v237, 0
    %v346 = vsub.s32 0, %v237
    %v347 = vsel %vm345, %v346, %v237
    %v348 = vshrl.u32 %v347, 3
    %v349 = vand.u32 %v347, 7
    %v350 = vsub.s32 0, %v349
    %v351 = vsel %vm345, %v350, %v349
    %vm352 = vcmp.ne.s32.totalorder %v246, 0
    %vm353 = vcmp.ne.s32.totalorder %v253, 0
    %vm354 = vcmp.ne.s32.totalorder %v260, 0
    %vm355 = vcmp.ne.s32.totalorder %v267, 0
    %vm356 = vcmp.ne.s32.totalorder %v274, 0
    %vm357 = vcmp.ne.s32.totalorder %v281, 0
    %vm358 = vcmp.ne.s32.totalorder %v288, 0
    %vm359 = vcmp.ne.s32.totalorder %v295, 0
    %vm360 = vcmp.ne.s32.totalorder %v302, 0
    %vm361 = vcmp.ne.s32.totalorder %v309, 0
    %vm362 = vcmp.ne.s32.totalorder %v316, 0
    %vm363 = vcmp.ne.s32.totalorder %v323, 0
    %vm364 = vcmp.ne.s32.totalorder %v330, 0
    %vm365 = vcmp.ne.s32.totalorder %v337, 0
    %vm366 = vcmp.ne.s32.totalorder %v344, 0
    %vm367 = vcmp.ne.s32.totalorder %v351, 0
    %vm368 = vcmp.lt.s32.totalorder %v246, 0
    %vm369 = vcmp.lt.s32.totalorder %v253, 0
    %vm370 = vcmp.lt.s32.totalorder %v260, 0
    %vm371 = vcmp.lt.s32.totalorder %v267, 0
    %vm372 = vcmp.lt.s32.totalorder %v274, 0
    %vm373 = vcmp.lt.s32.totalorder %v281, 0
    %vm374 = vcmp.lt.s32.totalorder %v288, 0
    %vm375 = vcmp.lt.s32.totalorder %v295, 0
    %vm376 = vcmp.lt.s32.totalorder %v302, 0
    %vm377 = vcmp.lt.s32.totalorder %v309, 0
    %vm378 = vcmp.lt.s32.totalorder %v316, 0
    %vm379 = vcmp.lt.s32.totalorder %v323, 0
    %vm380 = vcmp.lt.s32.totalorder %v330, 0
    %vm381 = vcmp.lt.s32.totalorder %v337, 0
    %vm382 = vcmp.lt.s32.totalorder %v344, 0
    %vm383 = vcmp.lt.s32.totalorder %v351, 0
    %vm384 = vmand %vm368, %vm352
    %vm385 = vmand %vm369, %vm353
    %vm386 = vmand %vm370, %vm354
    %vm387 = vmand %vm371, %vm355
    %vm388 = vmand %vm372, %vm356
    %vm389 = vmand %vm373, %vm357
    %vm390 = vmand %vm374, %vm358
    %vm391 = vmand %vm375, %vm359
    %vm392 = vmand %vm376, %vm360
    %vm393 = vmand %vm377, %vm361
    %vm394 = vmand %vm378, %vm362
    %vm395 = vmand %vm379, %vm363
    %vm396 = vmand %vm380, %vm364
    %vm397 = vmand %vm381, %vm365
    %vm398 = vmand %vm382, %vm366
    %vm399 = vmand %vm383, %vm367
    %v400 = vadd.s32 %v246, 8
    %v401 = vadd.s32 %v253, 8
    %v402 = vadd.s32 %v260, 8
    %v403 = vadd.s32 %v267, 8
    %v404 = vadd.s32 %v274, 8
    %v405 = vadd.s32 %v281, 8
    %v406 = vadd.s32 %v288, 8
    %v407 = vadd.s32 %v295, 8
    %v408 = vadd.s32 %v302, 8
    %v409 = vadd.s32 %v309, 8
    %v410 = vadd.s32 %v316, 8
    %v411 = vadd.s32 %v323, 8
    %v412 = vadd.s32 %v330, 8
    %v413 = vadd.s32 %v337, 8
    %v414 = vadd.s32 %v344, 8
    %v415 = vadd.s32 %v351, 8
    %v416 = vsel %vm384, %v400, %v246
    %v417 = vsel %vm385, %v401, %v253
    %v418 = vsel %vm386, %v402, %v260
    %v419 = vsel %vm387, %v403, %v267
    %v420 = vsel %vm388, %v404, %v274
    %v421 = vsel %vm389, %v405, %v281
    %v422 = vsel %vm390, %v406, %v288
    %v423 = vsel %vm391, %v407, %v295
    %v424 = vsel %vm392, %v408, %v302
    %v425 = vsel %vm393, %v409, %v309
    %v426 = vsel %vm394, %v410, %v316
    %v427 = vsel %vm395, %v411, %v323
    %v428 = vsel %vm396, %v412, %v330
    %v429 = vsel %vm397, %v413, %v337
    %v430 = vsel %vm398, %v414, %v344
    %v431 = vsel %vm399, %v415, %v351
    %vm432 = vcmp.eq.s32.totalorder %v416, %v239
    %vm433 = vcmp.eq.s32.totalorder %v417, %v239
    %vm434 = vcmp.eq.s32.totalorder %v418, %v239
    %vm435 = vcmp.eq.s32.totalorder %v419, %v239
    %vm436 = vcmp.eq.s32.totalorder %v420, %v239
    %vm437 = vcmp.eq.s32.totalorder %v421, %v239
    %vm438 = vcmp.eq.s32.totalorder %v422, %v239
    %vm439 = vcmp.eq.s32.totalorder %v423, %v239
    %vm440 = vcmp.eq.s32.totalorder %v424, %v239
    %vm441 = vcmp.eq.s32.totalorder %v425, %v239
    %vm442 = vcmp.eq.s32.totalorder %v426, %v239
    %vm443 = vcmp.eq.s32.totalorder %v427, %v239
    %vm444 = vcmp.eq.s32.totalorder %v428, %v239
    %vm445 = vcmp.eq.s32.totalorder %v429, %v239
    %vm446 = vcmp.eq.s32.totalorder %v430, %v239
    %vm447 = vcmp.eq.s32.totalorder %v431, %v239
    %v448 = vsel %vm432, 1, 0
    %v449 = vsel %vm433, 1, 0
    %v450 = vsel %vm434, 1, 0
    %v451 = vsel %vm435, 1, 0
    %v452 = vsel %vm436, 1, 0
    %v453 = vsel %vm437, 1, 0
    %v454 = vsel %vm438, 1, 0
    %v455 = vsel %vm439, 1, 0
    %v456 = vsel %vm440, 1, 0
    %v457 = vsel %vm441, 1, 0
    %v458 = vsel %vm442, 1, 0
    %v459 = vsel %vm443, 1, 0
    %v460 = vsel %vm444, 1, 0
    %v461 = vsel %vm445, 1, 0
    %v462 = vsel %vm446, 1, 0
    %v463 = vsel %vm447, 1, 0
    %v464 = vcvt.s32.f32 %v448
    %v465 = vcvt.s32.f32 %v449
    %v466 = vcvt.s32.f32 %v450
    %v467 = vcvt.s32.f32 %v451
    %v468 = vcvt.s32.f32 %v452
    %v469 = vcvt.s32.f32 %v453
    %v470 = vcvt.s32.f32 %v454
    %v471 = vcvt.s32.f32 %v455
    %v472 = vcvt.s32.f32 %v456
    %v473 = vcvt.s32.f32 %v457
    %v474 = vcvt.s32.f32 %v458
    %v475 = vcvt.s32.f32 %v459
    %v476 = vcvt.s32.f32 %v460
    %v477 = vcvt.s32.f32 %v461
    %v478 = vcvt.s32.f32 %v462
    %v479 = vcvt.s32.f32 %v463
    %v480 = vadd.f32 %v210, %v213
    %v481 = vadd.f32 %v480, %v216
    %v482 = vadd.f32 %v481, %v219
    %v483 = vrot.slane %v482, 4
    %v484 = vadd.f32 %v482, %v483
    %v485 = vrot.slane %v484, 2
    %v486 = vadd.f32 %v484, %v485
    %v487 = vrot.slane %v486, 1
    %v488 = vadd.f32 %v486, %v487
    %v489 = vmul.f32 %v210, %v210
    %v490 = vmul.f32 %v213, %v213
    %v491 = vmul.f32 %v216, %v216
    %v492 = vmul.f32 %v219, %v219
    %v493 = vadd.f32 %v489, %v490
    %v494 = vadd.f32 %v493, %v491
    %v495 = vadd.f32 %v494, %v492
    %v496 = vrot.slane %v495, 4
    %v497 = vadd.f32 %v495, %v496
    %v498 = vrot.slane %v497, 2
    %v499 = vadd.f32 %v497, %v498
    %v500 = vrot.slane %v499, 1
    %v501 = vadd.f32 %v499, %v500
    %v502 = vsel %vm88, %v488, %v501
    %503 = vmatpush.msra.mxu0 %v479
    %504 = vmatpush.msra.mxu0 %v478
    %505 = vmatpush.msra.mxu0 %v477
    %506 = vmatpush.msra.mxu0 %v476
    %507 = vmatpush.msra.mxu0 %v475
    %508 = vmatpush.msra.mxu0 %v474
    %509 = vmatpush.msra.mxu0 %v473
    %510 = vmatpush.msra.mxu0 %v472
    %511 = vmatpush.msra.mxu0 %v471
    %512 = vmatpush.msra.mxu0 %v470
    %513 = vmatpush.msra.mxu0 %v469
    %514 = vmatpush.msra.mxu0 %v468
    %515 = vmatpush.msra.mxu0 %v467
    %516 = vmatpush.msra.mxu0 %v466
    %517 = vmatpush.msra.mxu0 %v465
    %518 = vmatpush.msra.mxu0 %v464
    %519 = vmatmul.f32.gmra.mxu0 %v502
    %v520 = vpop.f32.mrf.mxu0
    %v521 = vadd.f32 0.0, %v520
    %522 = vdwg.mxu0
    %v523 = vrcp.pop 512.0
    %v524 = vmul.f32 512.0, %v523
    %v525 = vsub.f32 1.0, %v524
    %v526 = vmul.f32 %v523, %v525
    %v527 = vadd.f32 %v523, %v526
    %vm528 = vweird.f32 %v523
    %v529 = vsel %vm528, %v523, %v527
    %v530 = vmul.f32 %v521, %v529
    %v531 = vmul.f32 %v530, %v530
    %v533 = vrot.slane %v531, 7
    %v535 = vsub.f32 %v530, %v533
    %v536 = vmax.f32 %v535, 0.0
    %v537 = vadd.f32 %v536, 1e-05
    %v538 = vrsqrt.pop %v537
    %v539 = vmul.f32 %v538, %v537
    %v540 = vmul.f32 %v539, %v538
    %v541 = vmul.f32 0.5, %v540
    %v542 = vsub.f32 1.5, %v541
    %v543 = vmul.f32 %v538, %v542
    %vm544 = vweird.f32 %v537
    %vm545 = vweird.f32 %v538
    %vm546 = vmor %vm544, %vm545
    %v547 = vsel %vm546, %v538, %v543
    %v549 = vrot.slane %v547, 1
    %v551 = vmul.f32 %v79, %v549
    %v552 = vmul.f32 %v530, %v551
    %v554 = vrot.slane %v552, 7
    %v556 = vsub.f32 %v79, %v554
    %v557 = vsel %vm88, %v551, %v556
    %vm558 = vcmask 64512
    %v560 = vsel %vm558, %v557, 0
    %v563 = vsel %vm558, %v464, 0
    %v566 = vsel %vm558, %v465, 0
    %v569 = vsel %vm558, %v466, 0
    %v572 = vsel %vm558, %v467, 0
    %v575 = vsel %vm558, %v468, 0
    %v578 = vsel %vm558, %v469, 0
    %v581 = vsel %vm558, %v470, 0
    %v584 = vsel %vm558, %v471, 0
    %v587 = vsel %vm558, %v472, 0
    %v590 = vsel %vm558, %v473, 0
    %v593 = vsel %vm558, %v474, 0
    %v596 = vsel %vm558, %v475, 0
    %v599 = vsel %vm558, %v476, 0
    %v602 = vsel %vm558, %v477, 0
    %v605 = vsel %vm558, %v478, 0
    %v608 = vsel %vm558, %v479, 0
    %610 = vmatpush.xpose.msra.mxu0 %v608
    %611 = vmatpush.xpose.msra.mxu0 %v605
    %612 = vmatpush.xpose.msra.mxu0 %v602
    %613 = vmatpush.xpose.msra.mxu0 %v599
    %614 = vmatpush.xpose.msra.mxu0 %v596
    %615 = vmatpush.xpose.msra.mxu0 %v593
    %616 = vmatpush.xpose.msra.mxu0 %v590
    %617 = vmatpush.xpose.msra.mxu0 %v587
    %618 = vmatpush.xpose.msra.mxu0 %v584
    %619 = vmatpush.xpose.msra.mxu0 %v581
    %620 = vmatpush.xpose.msra.mxu0 %v578
    %621 = vmatpush.xpose.msra.mxu0 %v575
    %622 = vmatpush.xpose.msra.mxu0 %v572
    %623 = vmatpush.xpose.msra.mxu0 %v569
    %624 = vmatpush.xpose.msra.mxu0 %v566
    %625 = vmatpush.xpose.msra.mxu0 %v563
    %626 = vmatmul.f32.gmra.mxu0 %v560
    %v627 = vpop.f32.mrf.mxu0
    %v628 = vadd.f32 0.0, %v627
    %629 = vdwg.mxu0
    %v630 = vperm.slane %v628, 0
    %v631 = vmul.f32 %v210, %v630
    %v632 = vmul.f32 %v213, %v630
    %v633 = vmul.f32 %v216, %v630
    %v634 = vmul.f32 %v219, %v630
    %v635 = vperm.slane %v628, 1
    %v636 = vadd.f32 %v631, %v635
    %v637 = vadd.f32 %v632, %v635
    %v638 = vadd.f32 %v633, %v635
    %v639 = vadd.f32 %v634, %v635
    %v640 = vmax.f32 %v636, 0.0
    %v641 = vmax.f32 %v637, 0.0
    %v642 = vmax.f32 %v638, 0.0
    %v643 = vmax.f32 %v639, 0.0
    %v648 = vrot.slane %v640, 7
    %v649 = vrot.slane %v641, 7
    %v650 = vsel %vm88, %v648, %v649
    %v651 = vrot.slane %v642, 7
    %v652 = vrot.slane %v643, 7
    %v653 = vsel %vm88, %v651, %v652
    %v658 = vsel %vm88, 0.0, %v648
    %v659 = vsel %vm88, 0.0, %v651
    %v660 = vrot.slane %v640, 1
    %v661 = vrot.slane %v641, 1
    %v662 = vsel %vm101, %v660, %v661
    %v663 = vrot.slane %v642, 1
    %v664 = vrot.slane %v643, 1
    %v665 = vsel %vm101, %v663, %v664
    %v670 = vsel %vm101, %v661, 0.0
    %v671 = vsel %vm101, %v664, 0.0
    %v672 = vld [vmem:[#allocation7] sm:$0xff]
    %v673 = vld [vmem:[#allocation7 + $0x8] sm:$0xff]
    %v674 = vld [vmem:[#allocation7 + $0x10] sm:$0xff]
    %v675 = vld [vmem:[#allocation7 + $0x18] sm:$0xff]
    %v676 = vld [vmem:[#allocation7 + $0x20] sm:$0xff]
    %v677 = vld [vmem:[#allocation7 + $0x28] sm:$0xff]
    %v678 = vld [vmem:[#allocation7 + $0x30] sm:$0xff]
    %v679 = vld [vmem:[#allocation7 + $0x38] sm:$0xff]
    %v680 = vld [vmem:[#allocation7 + $0x40] sm:$0xff]
    %v681 = vld [vmem:[#allocation7 + $0x48] sm:$0xff]
    %v682 = vld [vmem:[#allocation7 + $0x50] sm:$0xff]
    %v683 = vld [vmem:[#allocation7 + $0x58] sm:$0xff]
    %v684 = vld [vmem:[#allocation7 + $0x60] sm:$0xff]
    %v685 = vld [vmem:[#allocation7 + $0x68] sm:$0xff]
    %v686 = vld [vmem:[#allocation7 + $0x70] sm:$0xff]
    %v687 = vld [vmem:[#allocation7 + $0x78] sm:$0xff]
    %v688 = vld [vmem:[#allocation7 + $0x80] sm:$0xff]
    %v689 = vld [vmem:[#allocation7 + $0x88] sm:$0xff]
    %v690 = vld [vmem:[#allocation7 + $0x90] sm:$0xff]
    %v691 = vld [vmem:[#allocation7 + $0x98] sm:$0xff]
    %v692 = vld [vmem:[#allocation7 + $0xa0] sm:$0xff]
    %v693 = vld [vmem:[#allocation7 + $0xa8] sm:$0xff]
    %v694 = vld [vmem:[#allocation7 + $0xb0] sm:$0xff]
    %v695 = vld [vmem:[#allocation7 + $0xb8] sm:$0xff]
    %v696 = vld [vmem:[#allocation7 + $0xc0] sm:$0xff]
    %v697 = vld [vmem:[#allocation7 + $0xc8] sm:$0xff]
    %v698 = vld [vmem:[#allocation7 + $0xd0] sm:$0xff]
    %v699 = vld [vmem:[#allocation7 + $0xd8] sm:$0xff]
    %v700 = vld [vmem:[#allocation7 + $0xe0] sm:$0xff]
    %v701 = vld [vmem:[#allocation7 + $0xe8] sm:$0xff]
    %v702 = vld [vmem:[#allocation7 + $0xf0] sm:$0xff]
    %v703 = vld [vmem:[#allocation7 + $0xf8] sm:$0xff]
    %v704 = vld [vmem:[#allocation7 + $0x100] sm:$0xff]
    %v705 = vld [vmem:[#allocation7 + $0x108] sm:$0xff]
    %v706 = vld [vmem:[#allocation7 + $0x110] sm:$0xff]
    %v707 = vld [vmem:[#allocation7 + $0x118] sm:$0xff]
    %v708 = vld [vmem:[#allocation7 + $0x120] sm:$0xff]
    %v709 = vld [vmem:[#allocation7 + $0x128] sm:$0xff]
    %v710 = vld [vmem:[#allocation7 + $0x130] sm:$0xff]
    %v711 = vld [vmem:[#allocation7 + $0x138] sm:$0xff]
    %v712 = vld [vmem:[#allocation7 + $0x140] sm:$0xff]
    %v713 = vld [vmem:[#allocation7 + $0x148] sm:$0xff]
    %v714 = vld [vmem:[#allocation7 + $0x150] sm:$0xff]
    %v715 = vld [vmem:[#allocation7 + $0x158] sm:$0xff]
    %v716 = vld [vmem:[#allocation7 + $0x160] sm:$0xff]
    %v717 = vld [vmem:[#allocation7 + $0x168] sm:$0xff]
    %v718 = vld [vmem:[#allocation7 + $0x170] sm:$0xff]
    %v719 = vld [vmem:[#allocation7 + $0x178] sm:$0xff]
    %720 = vmatpush.msra.mxu0 %v687
    %721 = vmatpush.msra.mxu0 %v686
    %722 = vmatpush.msra.mxu0 %v685
    %723 = vmatpush.msra.mxu0 %v684
    %724 = vmatpush.msra.mxu0 %v683
    %725 = vmatpush.msra.mxu0 %v682
    %726 = vmatpush.msra.mxu0 %v681
    %727 = vmatpush.msra.mxu0 %v680
    %728 = vmatpush.msra.mxu0 %v679
    %729 = vmatpush.msra.mxu0 %v678
    %730 = vmatpush.msra.mxu0 %v677
    %731 = vmatpush.msra.mxu0 %v676
    %732 = vmatpush.msra.mxu0 %v675
    %733 = vmatpush.msra.mxu0 %v674
    %734 = vmatpush.msra.mxu0 %v673
    %735 = vmatpush.msra.mxu0 %v672
    %736 = vmatmul.f32.gmra.mxu0 %v658
    %v737 = vpop.f32.mrf.mxu0
    %v738 = vadd.f32 0.0, %v737
    %739 = vmatmul.f32.gmra.mxu0 %v650
    %v740 = vpop.f32.mrf.mxu0
    %v741 = vadd.f32 0.0, %v740
    %742 = vmatmul.f32.gmra.mxu0 %v659
    %v743 = vpop.f32.mrf.mxu0
    %v744 = vadd.f32 0.0, %v743
    %745 = vmatmul.f32.gmra.mxu0 %v653
    %v746 = vpop.f32.mrf.mxu0
    %v747 = vadd.f32 0.0, %v746
    %748 = vdwg.mxu0
    %749 = vmatpush.msra.mxu0 %v703
    %750 = vmatpush.msra.mxu0 %v702
    %751 = vmatpush.msra.mxu0 %v701
    %752 = vmatpush.msra.mxu0 %v700
    %753 = vmatpush.msra.mxu0 %v699
    %754 = vmatpush.msra.mxu0 %v698
    %755 = vmatpush.msra.mxu0 %v697
    %756 = vmatpush.msra.mxu0 %v696
    %757 = vmatpush.msra.mxu0 %v695
    %758 = vmatpush.msra.mxu0 %v694
    %759 = vmatpush.msra.mxu0 %v693
    %760 = vmatpush.msra.mxu0 %v692
    %761 = vmatpush.msra.mxu0 %v691
    %762 = vmatpush.msra.mxu0 %v690
    %763 = vmatpush.msra.mxu0 %v689
    %764 = vmatpush.msra.mxu0 %v688
    %765 = vmatmul.f32.gmra.mxu0 %v640
    %v766 = vpop.f32.mrf.mxu0
    %v767 = vadd.f32 %v738, %v766
    %768 = vmatmul.f32.gmra.mxu0 %v641
    %v769 = vpop.f32.mrf.mxu0
    %v770 = vadd.f32 %v741, %v769
    %771 = vmatmul.f32.gmra.mxu0 %v642
    %v772 = vpop.f32.mrf.mxu0
    %v773 = vadd.f32 %v744, %v772
    %774 = vmatmul.f32.gmra.mxu0 %v643
    %v775 = vpop.f32.mrf.mxu0
    %v776 = vadd.f32 %v747, %v775
    %777 = vdwg.mxu0
    %778 = vmatpush.msra.mxu0 %v719
    %779 = vmatpush.msra.mxu0 %v718
    %780 = vmatpush.msra.mxu0 %v717
    %781 = vmatpush.msra.mxu0 %v716
    %782 = vmatpush.msra.mxu0 %v715
    %783 = vmatpush.msra.mxu0 %v714
    %784 = vmatpush.msra.mxu0 %v713
    %785 = vmatpush.msra.mxu0 %v712
    %786 = vmatpush.msra.mxu0 %v711
    %787 = vmatpush.msra.mxu0 %v710
    %788 = vmatpush.msra.mxu0 %v709
    %789 = vmatpush.msra.mxu0 %v708
    %790 = vmatpush.msra.mxu0 %v707
    %791 = vmatpush.msra.mxu0 %v706
    %792 = vmatpush.msra.mxu0 %v705
    %793 = vmatpush.msra.mxu0 %v704
    %794 = vmatmul.f32.gmra.mxu0 %v662
    %v795 = vpop.f32.mrf.mxu0
    %v796 = vadd.f32 %v767, %v795
    %797 = vmatmul.f32.gmra.mxu0 %v670
    %v798 = vpop.f32.mrf.mxu0
    %v799 = vadd.f32 %v770, %v798
    %800 = vmatmul.f32.gmra.mxu0 %v665
    %v801 = vpop.f32.mrf.mxu0
    %v802 = vadd.f32 %v773, %v801
    %803 = vmatmul.f32.gmra.mxu0 %v671
    %v804 = vpop.f32.mrf.mxu0
    %v805 = vadd.f32 %v776, %v804
    %806 = vdwg.mxu0
    %v807 = vadd.f32 %v796, %v799
    %v808 = vadd.f32 %v807, %v802
    %v809 = vadd.f32 %v808, %v805
    %v810 = vrot.slane %v809, 4
    %v811 = vadd.f32 %v809, %v810
    %v812 = vrot.slane %v811, 2
    %v813 = vadd.f32 %v811, %v812
    %v814 = vrot.slane %v813, 1
    %v815 = vadd.f32 %v813, %v814
    %v816 = vmul.f32 %v796, %v796
    %v817 = vmul.f32 %v799, %v799
    %v818 = vmul.f32 %v802, %v802
    %v819 = vmul.f32 %v805, %v805
    %v820 = vadd.f32 %v816, %v817
    %v821 = vadd.f32 %v820, %v818
    %v822 = vadd.f32 %v821, %v819
    %v823 = vrot.slane %v822, 4
    %v824 = vadd.f32 %v822, %v823
    %v825 = vrot.slane %v824, 2
    %v826 = vadd.f32 %v824, %v825
    %v827 = vrot.slane %v826, 1
    %v828 = vadd.f32 %v826, %v827
    %v829 = vsel %vm88, %v815, %v828
    %830 = vmatpush.msra.mxu0 %v479
    %831 = vmatpush.msra.mxu0 %v478
    %832 = vmatpush.msra.mxu0 %v477
    %833 = vmatpush.msra.mxu0 %v476
    %834 = vmatpush.msra.mxu0 %v475
    %835 = vmatpush.msra.mxu0 %v474
    %836 = vmatpush.msra.mxu0 %v473
    %837 = vmatpush.msra.mxu0 %v472
    %838 = vmatpush.msra.mxu0 %v471
    %839 = vmatpush.msra.mxu0 %v470
    %840 = vmatpush.msra.mxu0 %v469
    %841 = vmatpush.msra.mxu0 %v468
    %842 = vmatpush.msra.mxu0 %v467
    %843 = vmatpush.msra.mxu0 %v466
    %844 = vmatpush.msra.mxu0 %v465
    %845 = vmatpush.msra.mxu0 %v464
    %846 = vmatmul.f32.gmra.mxu0 %v829
    %v847 = vpop.f32.mrf.mxu0
    %v848 = vadd.f32 0.0, %v847
    %849 = vdwg.mxu0
    %v850 = vmul.f32 %v848, %v529
    %v851 = vmul.f32 %v850, %v850
    %v853 = vrot.slane %v851, 7
    %v855 = vsub.f32 %v850, %v853
    %v856 = vmax.f32 %v855, 0.0
    %v857 = vadd.f32 %v856, 1e-05
    %v858 = vrsqrt.pop %v857
    %v859 = vmul.f32 %v858, %v857
    %v860 = vmul.f32 %v859, %v858
    %v861 = vmul.f32 0.5, %v860
    %v862 = vsub.f32 1.5, %v861
    %v863 = vmul.f32 %v858, %v862
    %vm864 = vweird.f32 %v857
    %vm865 = vweird.f32 %v858
    %vm866 = vmor %vm864, %vm865
    %v867 = vsel %vm866, %v858, %v863
    %v869 = vrot.slane %v867, 7
    %v871 = vmul.f32 %v79, %v869
    %v873 = vrot.slane %v871, 2
    %v875 = vmul.f32 %v850, %v873
    %v877 = vrot.slane %v875, 5
    %v879 = vsub.f32 %v79, %v877
    %v881 = vrot.slane %v879, 2
    %v883 = vsel %vm88, %v873, %v881
    %v885 = vsel %vm558, %v883, 0
    %887 = vmatpush.xpose.msra.mxu0 %v608
    %888 = vmatpush.xpose.msra.mxu0 %v605
    %889 = vmatpush.xpose.msra.mxu0 %v602
    %890 = vmatpush.xpose.msra.mxu0 %v599
    %891 = vmatpush.xpose.msra.mxu0 %v596
    %892 = vmatpush.xpose.msra.mxu0 %v593
    %893 = vmatpush.xpose.msra.mxu0 %v590
    %894 = vmatpush.xpose.msra.mxu0 %v587
    %895 = vmatpush.xpose.msra.mxu0 %v584
    %896 = vmatpush.xpose.msra.mxu0 %v581
    %897 = vmatpush.xpose.msra.mxu0 %v578
    %898 = vmatpush.xpose.msra.mxu0 %v575
    %899 = vmatpush.xpose.msra.mxu0 %v572
    %900 = vmatpush.xpose.msra.mxu0 %v569
    %901 = vmatpush.xpose.msra.mxu0 %v566
    %902 = vmatpush.xpose.msra.mxu0 %v563
    %903 = vmatmul.f32.gmra.mxu0 %v885
    %v904 = vpop.f32.mrf.mxu0
    %v905 = vadd.f32 0.0, %v904
    %906 = vdwg.mxu0
    %v907 = vperm.slane %v905, 0
    %v908 = vmul.f32 %v796, %v907
    %v909 = vmul.f32 %v799, %v907
    %v910 = vmul.f32 %v802, %v907
    %v911 = vmul.f32 %v805, %v907
    %v912 = vperm.slane %v905, 1
    %v913 = vadd.f32 %v908, %v912
    %v914 = vadd.f32 %v909, %v912
    %v915 = vadd.f32 %v910, %v912
    %v916 = vadd.f32 %v911, %v912
    %v917 = vmax.f32 %v913, 0.0
    %v918 = vmax.f32 %v914, 0.0
    %v919 = vmax.f32 %v915, 0.0
    %v920 = vmax.f32 %v916, 0.0
    %921 = vst [vmem:[#allocation10] sm:$0xff] %v917
    %922 = vst [vmem:[#allocation10 + $0x8] sm:$0xff] %v918
    %923 = vst [vmem:[#allocation10 + $0x10] sm:$0xff] %v919
    %924 = vst [vmem:[#allocation10 + $0x18] sm:$0xff] %v920
    // Predicated region
    $region34: #{tpu_custom_call.1} parent=1 // pred_check
      _
    $region35: #{tpu_custom_call.1} parent=1 // pred_check_branch
      %926 = sbr.rel (0) target = $region37
    $region36: #{tpu_custom_call.1} parent=1 // pred_region
      %928 = vsyncadd [#allocation4], 0
      %s929 = sshll.u32 [#allocation10], 4
      %s930 = int_to_ptr.vmem [resolvable:$true] %s929
      %s931 = sshll.u32 %s4, 4
      %s932 = int_to_ptr.hbm [resolvable:$true] %s931
      %937 = dma.vmem_to_hbm [thread:$0]  %s930, 512, %s932, [#allocation4], 128, 128, 8
    $region37: #{tpu_custom_call.1} parent=1 // pred_fallthru
      _
    // Predicated region
    $region38: #{tpu_custom_call.1} parent=1 // pred_check
      _
    $region39: #{tpu_custom_call.1} parent=1 // pred_check_branch
      %939 = sbr.rel (0) target = $region41
    $region40: #{tpu_custom_call.1} parent=1 // pred_region
      %941 = dma.done [#allocation4], 512
    $region41: #{tpu_custom_call.1} parent=1 // pred_fallthru
      _
    %942 = vsyncpa [#allocation3], 1
    %943 = vsyncpa [#allocation6], 1
    %944 = vsyncpa [#allocation9], 1
    %945 = vsyncpa [#allocation4], 1

</llo_original>
